<compile_context>
chip_gen: v5e
topology: v5e:2x2
jax: 0.10.0
libtpu: 0.0.40
codegen_flags: <defaults>
</compile_context>

<pallas_src>
import functools

import jax
import jax.numpy as jnp
from jax.experimental import pallas as pl
from jax.experimental.pallas import tpu as pltpu


def _stripe_add_kernel(prompt_ref, x_ref, o_ref):
    # prompt_ref: (1, C, pad8, W) resident; x_ref / o_ref: (tb, C, pad8, W).
    # Single unmasked VPU add; the prompt broadcasts over the batch tile.
    o_ref[...] = x_ref[...] + prompt_ref[...]


def _round_up(n, m):
    return ((n + m - 1) // m) * m


def _vmem_limit_bytes():
    """Generation-aware scoped-VMEM limit (v5e/v6e: 128 MiB, v7x: 64 MiB/TC)."""
    try:
        cap = int(pltpu.get_tpu_info().vmem_capacity_bytes)
    except Exception:
        cap = 64 * 1024 * 1024  # conservative (v7x per-TC) floor
    return min((cap * 3) // 4, 96 * 1024 * 1024)


def _pick_batch_tile(B, bytes_per_image, budget_bytes):
    """Largest batch tile within the per-buffer VMEM budget, preferring an
    even number of grid steps (>= 2) so v7x megacore shards the parallel
    batch axis evenly over both TensorCores."""
    max_tb = max(1, min(B, budget_bytes // max(bytes_per_image, 1)))
    min_steps = pl.cdiv(B, max_tb)
    for steps in range(min_steps, min_steps + 16):
        if steps >= 2 and steps % 2 == 0:
            tb = pl.cdiv(B, steps)
            if tb <= max_tb and pl.cdiv(B, tb) % 2 == 0:
                return tb
    return max_tb


def stripe_pad_prompter(x, pad_down, *, small_fallback=True,
                        small_bytes=1 << 20):
    """x: [B, C, H, W]; pad_down: [1, C, pad_size, W].
    Returns x + concat([pad_down, zeros], axis=2) broadcast over batch.

    For best performance call under jit with x donated, e.g.
    jax.jit(stripe_pad_prompter, donate_argnums=(0,)): the kernel then updates
    only the top pad stripe in place via input_output_aliases."""
    B, C, H, W = x.shape
    _, Cp, pad_size, Wp = pad_down.shape
    assert Cp == C and Wp == W and 0 < pad_size <= H

    # Accumulate in x.dtype (pad_down cast first). For the reference module
    # both tensors are float32, so this matches PyTorch exactly.
    pad_down = pad_down.astype(x.dtype)

    if small_fallback and x.size * jnp.dtype(x.dtype).itemsize < small_bytes:
        # Tiny problem: a fused XLA elementwise add beats Pallas dispatch.
        prompt = jnp.zeros((1, C, H, W), x.dtype)
        prompt = prompt.at[:, :, :pad_size, :].set(pad_down)
        return x + prompt

    # Stripe rows rounded up to a sublane multiple (the (8, 128) block rule);
    # the extra rows add zeros, i.e. are written back unchanged.
    pad8 = min(_round_up(pad_size, 8), H)
    if pad8 > pad_size:
        prompt = jnp.concatenate(
            [pad_down, jnp.zeros((1, C, pad8 - pad_size, W), x.dtype)], axis=2)
    else:
        prompt = pad_down

    itemsize = jnp.dtype(x.dtype).itemsize
    stripe_bytes = C * pad8 * W * itemsize          # per image == prompt size
    vmem_limit = _vmem_limit_bytes()
    # Budget: 2x double-buffered input + 2x output tiles + resident prompt.
    per_buffer_budget = max((vmem_limit - stripe_bytes) // 5, 1)
    tb = _pick_batch_tile(B, stripe_bytes, per_buffer_budget)
    grid = (pl.cdiv(B, tb),)

    # TODO(synk): a second "parallel" grid axis over W-tiles would give v7x
    # megacore work even when the batch grid collapses to one step; the stripe
    # traffic is already tiny so it is omitted here.
    return pl.pallas_call(
        _stripe_add_kernel,
        out_shape=jax.ShapeDtypeStruct(x.shape, x.dtype),
        grid=grid,
        in_specs=[
            # Resident prompt stripe: same block every step.
            pl.BlockSpec((1, C, pad8, W), lambda b: (0, 0, 0, 0)),
            # Top-of-image stripe of the current batch tile.
            pl.BlockSpec((tb, C, pad8, W), lambda b: (b, 0, 0, 0)),
        ],
        out_specs=pl.BlockSpec((tb, C, pad8, W), lambda b: (b, 0, 0, 0)),
        # x is aliased to the output: rows below the stripe are never DMA'd.
        input_output_aliases={1: 0},
        compiler_params=pltpu.CompilerParams(
            dimension_semantics=("parallel",),
            vmem_limit_bytes=vmem_limit,
        ),
    )(prompt, x)


if __name__ == "__main__":
    # args.image_size = 16, args.prompt_size = 4, batch = 2, channels fixed at 3
    image_size = 16
    pad_size = 4
    batch = 2

    key = jax.random.PRNGKey(0)
    k_pad, k_x = jax.random.split(key)

    pad_down = jax.random.normal(
        k_pad, (1, 3, pad_size, image_size), dtype=jnp.float32)
    x = jax.random.normal(
        k_x, (batch, 3, image_size, image_size), dtype=jnp.float32)

    # Pure-JAX reference, computed BEFORE the kernel call because x is donated
    # to the in-place Pallas path below.
    prompt_full = jnp.concatenate(
        [pad_down,
         jnp.zeros((1, 3, image_size - pad_size, image_size), jnp.float32)],
        axis=2)
    ref = jax.block_until_ready(x + prompt_full)

    @functools.partial(jax.jit, donate_argnums=(0,))
    def fwd(x_, pad_down_):
        # Fallback disabled so the Pallas kernel itself is exercised even at
        # this tiny demo shape.
        return stripe_pad_prompter(x_, pad_down_, small_fallback=False)

    out = jax.block_until_ready(fwd(x, pad_down))

    assert out.shape == ref.shape and out.dtype == ref.dtype
    assert jnp.allclose(out, ref, atol=1e-6), "mismatch vs reference"

    print("KERNEL_OK")
</pallas_src>

<mosaic_0001>
module attributes {stable_mosaic.version = 11 : i64} {
  func.func @_stripe_add_kernel(%arg0: i32, %arg1: memref<1x3x8x16xf32, #tpu.memory_space<vmem>>, %arg2: memref<1x3x8x16xf32, #tpu.memory_space<vmem>>, %arg3: memref<1x3x8x16xf32, #tpu.memory_space<vmem>>) attributes {dimension_semantics = [#tpu.dimension_semantics<parallel>], iteration_bounds = array<i64: 2>, scalar_prefetch = 0 : i64, scratch_operands = 0 : i64, tpu.core_type = #tpu.core_type<tc>, window_params = [{pipeline_mode = #tpu.pipeline_mode<synchronous>, transform_indices = @transform_0, window_bounds = array<i64: 1, 3, 8, 16>}, {transform_indices = @transform_1, window_bounds = array<i64: 1, 3, 8, 16>}, {transform_indices = @transform_2, window_bounds = array<i64: 1, 3, 8, 16>}]} {
    %c0 = arith.constant 0 : index
    %c0_0 = arith.constant 0 : index
    %c0_1 = arith.constant 0 : index
    %c0_2 = arith.constant 0 : index
    %0 = vector.load %arg2[%c0, %c0_0, %c0_1, %c0_2] : memref<1x3x8x16xf32, #tpu.memory_space<vmem>>, vector<1x3x8x16xf32>
    %c0_3 = arith.constant 0 : index
    %c0_4 = arith.constant 0 : index
    %c0_5 = arith.constant 0 : index
    %c0_6 = arith.constant 0 : index
    %1 = vector.load %arg1[%c0_3, %c0_4, %c0_5, %c0_6] : memref<1x3x8x16xf32, #tpu.memory_space<vmem>>, vector<1x3x8x16xf32>
    %2 = arith.addf %0, %1 : vector<1x3x8x16xf32>
    %c0_7 = arith.constant 0 : index
    %c0_8 = arith.constant 0 : index
    %c0_9 = arith.constant 0 : index
    %c0_10 = arith.constant 0 : index
    %3 = vector.load %arg3[%c0_7, %c0_8, %c0_9, %c0_10] : memref<1x3x8x16xf32, #tpu.memory_space<vmem>>, vector<1x3x8x16xf32>
    tpu.vector_store %arg3[%c0_7, %c0_8, %c0_9, %c0_10], %2 {strides = array<i32>} : memref<1x3x8x16xf32, #tpu.memory_space<vmem>>, vector<1x3x8x16xf32>,
    return
  }
  func.func @transform_0(%arg0: i32) -> (i32, i32, i32, i32) {
    %c0_i32 = arith.constant 0 : i32
    %c0_i32_0 = arith.constant 0 : i32
    %c0_i32_1 = arith.constant 0 : i32
    %c0_i32_2 = arith.constant 0 : i32
    %c0_i32_3 = arith.constant 0 : i32
    return %c0_i32, %c0_i32_0, %c0_i32_1, %c0_i32_2 : i32, i32, i32, i32
  }
  func.func @transform_1(%arg0: i32) -> (i32, i32, i32, i32) {
    %c0_i32 = arith.constant 0 : i32
    %c0_i32_0 = arith.constant 0 : i32
    %c0_i32_1 = arith.constant 0 : i32
    %c0_i32_2 = arith.constant 0 : i32
    return %arg0, %c0_i32, %c0_i32_0, %c0_i32_1 : i32, i32, i32, i32
  }
  func.func @transform_2(%arg0: i32) -> (i32, i32, i32, i32) {
    %c0_i32 = arith.constant 0 : i32
    %c0_i32_0 = arith.constant 0 : i32
    %c0_i32_1 = arith.constant 0 : i32
    %c0_i32_2 = arith.constant 0 : i32
    return %arg0, %c0_i32, %c0_i32_0, %c0_i32_1 : i32, i32, i32, i32
  }
}

</mosaic_0001>

<llo_original>
// kernel: fwd.1
$region0: #{fwd.1}
  #allocation0 [shape = 'u32[]', space=smem, size = 0x4, offset = 0x4, fixed_abs, tag = 'smem constant byte address 0x4 - core index']
  #allocation1 [shape = 'u32[72,128]{1,0:T(1,128)}', space=vmem, size = 0x9000, scoped, tag = 'internal scratch']
  %s0 = inlined_call_operand.vmem [shape: f32[1,3,8,16], index: 0, kind: input, shape index: {}]
  %s1 = inlined_call_operand.hbm [shape: f32[2,3,16,16], index: 1, kind: input, shape index: {}, may-alias: {1,2}]
  %s2 = inlined_call_operand.hbm [shape: f32[2,3,16,16], index: 2, kind: output, shape index: {}, may-alias: {1,2}]
  %s3 = sld [smem:[#allocation0]]
  $region45: #{fwd.1} parent=0
    _
  %s5 = ssub.s32 1, %s3
  %s6 = scalar_select 0, %s5, %s3
  $region1: #{fwd.1} parent=0
    #allocation2 [shape = 'u8[24576]{0}', space=vmem, size = 0x6000, scoped, tag = 'input window, operand 1']
    #allocation3 [shape = 's32[2]{0}', space=sflag, size = 0x8, scoped, tag = 'scoped memory for fwd.1']
    #allocation4 [shape = 's32[2]{0}', space=sflag, size = 0x8, scoped, tag = 'scoped memory for fwd.1']
    #allocation5 [shape = 'u8[24576]{0}', space=vmem, size = 0x6000, scoped, tag = 'output window, operand 0']
    %7 = vsyncpa [#allocation3], 0
    %s8 = scalar_lea.sflag [#allocation3], 1
    %9 = vsyncpa %s8, 0
    %10 = vsyncpa [#allocation4], 0
    %s11 = scalar_lea.sflag [#allocation4], 1
    %12 = vsyncpa %s11, 0
    loop: start=0, step=1, limit=4
    $region2: #{fwd.1} parent=1 // loop_pre_header
      _
    $region3: #{fwd.1} parent=1 // loop_header
      %s14 = sphi 0, %s18
      %p15 = scmp.ge.s32.totalorder %s14, 4
      %s22 = sphi 0, %s22
      %s24 = sphi 0, %s22
      %s25 = sphi 0, %s24
      %s39 = sphi 0, %s25
      %s45 = sphi 0, %s47
      %s48 = sphi 0, %s45
      %s49 = sphi 0, %s48
      %s65 = sphi 0, %s49
      %s71 = sphi 0, %s73
      %s74 = sphi 0, %s71
      %s75 = sphi 0, %s74
      %s91 = sphi 0, %s75
    $region4: #{fwd.1} parent=1 // loop_header_branch
      %17 = sbr.rel (%p15) target = $region8
    $region5: #{fwd.1} parent=1 // loop_body
      %s19 = ssub.s32 %s14, 1
      %s20 = ssub.s32 %s14, 2
      %s21 = sadd.s32 %s14, 1
      %s23 = sadd.s32 %s22, 1
      %p26 = scmp.eq.s32.totalorder %s14, 1
      %p27 = scmp.ne.s32.totalorder %s22, %s24
      %p28 = scmp.eq.s32.totalorder %s14, 0
      %p29 = por %p27, %p28
      %p30 = scmp.ne.s32.totalorder %s22, %s24
      %p31 = scmp.eq.s32.totalorder %s19, 1
      %p32 = por %p30, %p31
      %p33 = scmp.ne.s32.totalorder %s24, %s25
      %p34 = scmp.eq.s32.totalorder %s19, 0
      %p35 = por %p33, %p34
      %p36 = scmp.ne.s32.totalorder %s24, %s25
      %p37 = scmp.eq.s32.totalorder %s20, 1
      %p38 = por %p36, %p37
      %p40 = scmp.ne.s32.totalorder %s25, %s39
      %p41 = scmp.eq.s32.totalorder %s20, 0
      %p42 = por %p40, %p41
      %s43 = ssub.s32 %s14, %s21
      %p44 = scmp.eq.s32.totalorder %s43, 0
      %s46 = sadd.s32 %s45, 1
      %s47 = scalar_select %p44, %s45, %s46
      %p50 = pneg %p44
      %p51 = scmp.eq.s32.totalorder %s14, 1
      %p52 = por %p50, %p51
      %p53 = scmp.ne.s32.totalorder %s45, %s48
      %p54 = scmp.eq.s32.totalorder %s14, 0
      %p55 = por %p53, %p54
      %p56 = scmp.ne.s32.totalorder %s45, %s48
      %p57 = scmp.eq.s32.totalorder %s19, 1
      %p58 = por %p56, %p57
      %p59 = scmp.ne.s32.totalorder %s48, %s49
      %p60 = scmp.eq.s32.totalorder %s19, 0
      %p61 = por %p59, %p60
      %p62 = scmp.ne.s32.totalorder %s48, %s49
      %p63 = scmp.eq.s32.totalorder %s20, 1
      %p64 = por %p62, %p63
      %p66 = scmp.ne.s32.totalorder %s49, %s65
      %p67 = scmp.eq.s32.totalorder %s20, 0
      %p68 = por %p66, %p67
      %s69 = ssub.s32 %s14, %s21
      %p70 = scmp.eq.s32.totalorder %s69, 0
      %s72 = sadd.s32 %s71, 1
      %s73 = scalar_select %p70, %s71, %s72
      %p76 = pneg %p70
      %p77 = scmp.eq.s32.totalorder %s14, 1
      %p78 = por %p76, %p77
      %p79 = scmp.ne.s32.totalorder %s71, %s74
      %p80 = scmp.eq.s32.totalorder %s14, 0
      %p81 = por %p79, %p80
      %p82 = scmp.ne.s32.totalorder %s71, %s74
      %p83 = scmp.eq.s32.totalorder %s19, 1
      %p84 = por %p82, %p83
      %p85 = scmp.ne.s32.totalorder %s74, %s75
      %p86 = scmp.eq.s32.totalorder %s19, 0
      %p87 = por %p85, %p86
      %p88 = scmp.ne.s32.totalorder %s74, %s75
      %p89 = scmp.eq.s32.totalorder %s20, 1
      %p90 = por %p88, %p89
      %p92 = scmp.ne.s32.totalorder %s75, %s91
      %p93 = scmp.eq.s32.totalorder %s20, 0
      %p94 = por %p92, %p93
      %p95 = scmp.le.s32.totalorder 1, %s14
      %p96 = scmp.lt.s32.totalorder %s14, 3
      %p97 = pnand %p95, %p96
      %p98 = pneg %p97
      // Predicated region
      $region9: #{fwd.1} parent=5 // pred_check
        _
      $region10: #{fwd.1} parent=5 // pred_check_branch
        %100 = sbr.rel (%p97) target = $region12
      $region11: #{fwd.1} parent=5 // pred_region
        %s101 = ssub.s32 %s14, 1
        // Predicated region
        $region13: #{fwd.1} parent=11 // pred_check
          %p102 = pneg %p35
        $region14: #{fwd.1} parent=11 // pred_check_branch
          %104 = sbr.rel (%p102) target = $region16
        $region15: #{fwd.1} parent=11 // pred_region
          _
        $region16: #{fwd.1} parent=11 // pred_fallthru
          _
      $region12: #{fwd.1} parent=5 // pred_fallthru
        _
      %p105 = scmp.lt.s32.totalorder %s14, 2
      // Predicated region
      $region17: #{fwd.1} parent=5 // pred_check
        %p106 = pneg %p105
      $region18: #{fwd.1} parent=5 // pred_check_branch
        %108 = sbr.rel (%p106) target = $region20
      $region19: #{fwd.1} parent=5 // pred_region
        // Predicated region
        $region21: #{fwd.1} parent=19 // pred_check
          %p109 = pneg %p55
        $region22: #{fwd.1} parent=19 // pred_check_branch
          %111 = sbr.rel (%p109) target = $region24
        $region23: #{fwd.1} parent=19 // pred_region
          %s112 = sand.u32 %s45, 1
          %s113 = scalar_lea.sflag [#allocation3], %s112
          %s114 = sand.u32 %s45, 1
          %s115 = smul.addr %s114, 24
          %s116 = scalar_lea.vmem [#allocation2], %s115
          %118 = vsyncadd %s113, 0
          %s119 = smul.addr %s14, 6
          %s120 = smul.addr %s119, 8
          %s121 = scalar_lea.hbm %s1, %s120
          %s122 = sshll.u32 %s121, 4
          %s123 = int_to_ptr.hbm [resolvable:$true] %s122
          %s124 = sshll.u32 %s116, 4
          %s125 = int_to_ptr.vmem [resolvable:$true] %s124
          %130 = dma.hbm_to_vmem [thread:$0]  %s123, 384, %s125, %s113, 256, 128, 8
        $region24: #{fwd.1} parent=19 // pred_fallthru
          _
      $region20: #{fwd.1} parent=5 // pred_fallthru
        _
      %p131 = scmp.le.s32.totalorder 1, %s14
      %p132 = scmp.lt.s32.totalorder %s14, 3
      %p133 = pnand %p131, %p132
      %p134 = pneg %p133
      // Predicated region
      $region25: #{fwd.1} parent=5 // pred_check
        _
      $region26: #{fwd.1} parent=5 // pred_check_branch
        %136 = sbr.rel (%p133) target = $region28
      $region27: #{fwd.1} parent=5 // pred_region
        %s137 = ssub.s32 %s14, 1
        %s138 = sand.u32 %s48, 1
        %s139 = scalar_lea.sflag [#allocation3], %s138
        %s140 = sand.u32 %s48, 1
        %s141 = smul.addr %s140, 24
        %s142 = scalar_lea.vmem [#allocation2], %s141
        // Predicated region
        $region29: #{fwd.1} parent=27 // pred_check
          %p143 = pneg %p61
        $region30: #{fwd.1} parent=27 // pred_check_branch
          %145 = sbr.rel (%p143) target = $region32
        $region31: #{fwd.1} parent=27 // pred_region
          %147 = dma.done %s139, 384
        $region32: #{fwd.1} parent=27 // pred_fallthru
          _
        %p148 = pneg %p35
        %p149 = pneg %p32
        %s150 = sand.u32 %s48, 1
        %s151 = scalar_lea.sflag [#allocation3], %s150
        %s152 = sand.u32 %s48, 1
        %s153 = smul.addr %s152, 24
        %s154 = scalar_lea.vmem [#allocation2], %s153
        %p155 = pneg %p61
        %p156 = pneg %p58
        %p157 = pneg %p87
        %p158 = pneg %p84
        %s159 = sand.u32 %s74, 1
        %s160 = scalar_lea.sflag [#allocation4], %s159
        %s161 = sand.u32 %s74, 1
        %s162 = smul.addr %s161, 24
        %s163 = scalar_lea.vmem [#allocation5], %s162
        %v164 = vld [vmem:[%s142] sm:$0xff]
        %v165 = vld [vmem:[%s142 + $0x8] sm:$0xff]
        %v166 = vld [vmem:[%s142 + $0x10] sm:$0xff]
        %v167 = vld [vmem:[%s0] sm:$0xff]
        %v168 = vld [vmem:[%s0 + $0x8] sm:$0xff]
        %v169 = vld [vmem:[%s0 + $0x10] sm:$0xff]
        %v170 = vadd.f32 %v164, %v167
        %v171 = vadd.f32 %v165, %v168
        %v172 = vadd.f32 %v166, %v169
        %vm173 = vcmask 130048
        %174 = vst.msk [vmem:[%s163] sm:$0xff] %vm173, %v170
        %175 = vst.msk [vmem:[%s163 + $0x8] sm:$0xff] %vm173, %v171
        %176 = vst.msk [vmem:[%s163 + $0x10] sm:$0xff] %vm173, %v172
        %s177 = sand.u32 %s74, 1
        %s178 = scalar_lea.sflag [#allocation4], %s177
        %s179 = sand.u32 %s74, 1
        %s180 = smul.addr %s179, 24
        %s181 = scalar_lea.vmem [#allocation5], %s180
        // Predicated region
        $region33: #{fwd.1} parent=27 // pred_check
          %p182 = pneg %p84
        $region34: #{fwd.1} parent=27 // pred_check_branch
          %184 = sbr.rel (%p182) target = $region36
        $region35: #{fwd.1} parent=27 // pred_region
          %186 = vsyncadd %s178, 0
          %s187 = smul.addr %s19, 6
          %s188 = smul.addr %s187, 8
          %s189 = scalar_lea.hbm %s2, %s188
          %s190 = sshll.u32 %s181, 4
          %s191 = int_to_ptr.vmem [resolvable:$true] %s190
          %s192 = sshll.u32 %s189, 4
          %s193 = int_to_ptr.hbm [resolvable:$true] %s192
          %198 = dma.vmem_to_hbm [thread:$0]  %s191, 384, %s193, %s178, 128, 256, 8
        $region36: #{fwd.1} parent=27 // pred_fallthru
          _
      $region28: #{fwd.1} parent=5 // pred_fallthru
        _
      %p199 = scmp.le.s32.totalorder 2, %s14
      // Predicated region
      $region37: #{fwd.1} parent=5 // pred_check
        %p200 = pneg %p199
      $region38: #{fwd.1} parent=5 // pred_check_branch
        %202 = sbr.rel (%p200) target = $region40
      $region39: #{fwd.1} parent=5 // pred_region
        %s203 = ssub.s32 %s14, 2
        // Predicated region
        $region41: #{fwd.1} parent=39 // pred_check
          %p204 = pneg %p90
        $region42: #{fwd.1} parent=39 // pred_check_branch
          %206 = sbr.rel (%p204) target = $region44
        $region43: #{fwd.1} parent=39 // pred_region
          %s207 = sand.u32 %s75, 1
          %s208 = scalar_lea.sflag [#allocation4], %s207
          %s209 = sand.u32 %s75, 1
          %s210 = smul.addr %s209, 24
          %s211 = scalar_lea.vmem [#allocation5], %s210
          %213 = dma.done %s208, 384
        $region44: #{fwd.1} parent=39 // pred_fallthru
          _
      $region40: #{fwd.1} parent=5 // pred_fallthru
        _
    $region6: #{fwd.1} parent=1 // loop_footer
      %s18 = sadd.s32 1, %s14
    $region7: #{fwd.1} parent=1 // loop_footer_branch
      %13 = sbr.rel target = $region3
    $region8: #{fwd.1} parent=1 // loop_exit
      _
    %214 = vsyncpa [#allocation3], 1
    %s215 = scalar_lea.sflag [#allocation3], 1
    %216 = vsyncpa %s215, 1
    %217 = vsyncpa [#allocation4], 1
    %s218 = scalar_lea.sflag [#allocation4], 1
    %219 = vsyncpa %s218, 1

</llo_original>
